<compile_context>
chip_gen: v7x
topology: tpu7x:2x2x1
jax: 0.10.0
libtpu: 0.0.40
codegen_flags: <defaults>
</compile_context>

<pallas_src>
import functools

import jax
import jax.numpy as jnp
from jax.experimental import pallas as pl
from jax.experimental.pallas import tpu as pltpu


def _round_up(x, m):
    return ((x + m - 1) // m) * m


# Row layout of the packed (4, D) parameter input.
_P_LOG_GAMMA, _P_BETA, _P_RMEAN, _P_RVAR = 0, 1, 2, 3
# Row layout of the packed (8, D) stats output (rows 5..7 are sublane padding).
_S_BMEAN, _S_BVAR, _S_NRM, _S_NRV, _S_LDT = 0, 1, 2, 3, 4


def _bnf_direct_kernel(x_ref, p_ref, y_ref, s_ref, *, eps, momentum):
    """One feature tile: batch stats, normalized output, packed per-feature rows."""
    xf = x_ref[...].astype(jnp.float32)                 # (B, tile_d)
    p = p_ref[...].astype(jnp.float32)                  # (4, tile_d)
    lg = p[_P_LOG_GAMMA:_P_LOG_GAMMA + 1]                # (1, tile_d)
    beta = p[_P_BETA:_P_BETA + 1]
    run_m = p[_P_RMEAN:_P_RMEAN + 1]
    run_v = p[_P_RVAR:_P_RVAR + 1]

    # Batch-axis (sublane) reduction, always in f32.
    mean = jnp.mean(xf, axis=0, keepdims=True)                      # (1, tile_d)
    var = jnp.mean((xf - mean) ** 2, axis=0, keepdims=True) + eps   # (1, tile_d)

    # Per-feature scale/shift -> one FMA per element (exp/rsqrt go to the EUP).
    scale = jnp.exp(lg) * jax.lax.rsqrt(var)
    shift = beta - mean * scale
    # f32 math; cast only at the store (v5e has no bf16 VALU anyway).
    y_ref[...] = (xf * scale + shift).astype(y_ref.dtype)

    ld_terms = lg - 0.5 * jnp.log(var)
    new_rm = run_m * momentum + mean * (1.0 - momentum)
    new_rv = run_v * momentum + var * (1.0 - momentum)

    # Packed (8, tile_d) stats block -> one full 8-sublane HBM tile store per
    # grid step (the per-row VMEM writes below are cheap masked vst's).
    s_ref[_S_BMEAN:_S_BMEAN + 1, :] = mean
    s_ref[_S_BVAR:_S_BVAR + 1, :] = var
    s_ref[_S_NRM:_S_NRM + 1, :] = new_rm
    s_ref[_S_NRV:_S_NRV + 1, :] = new_rv
    s_ref[_S_LDT:_S_LDT + 1, :] = ld_terms
    s_ref[5:8, :] = jnp.zeros((3, s_ref.shape[1]), jnp.float32)


def batch_norm_flow_direct(x, log_gamma, beta, running_mean, running_var,
                           *, eps=1e-5, momentum=0.0):
    """Training-mode 'direct' forward of BatchNormFlow.

    Returns:
      y:            (B, D)
      logdet:       (1,)  == sum(log_gamma - 0.5*log(batch_var))
      new_running_mean, new_running_var: (D,) updated buffers
      batch_mean, batch_var:             (D,) batch statistics (var includes eps)
    """
    B, D = x.shape
    itemsize = jnp.dtype(x.dtype).itemsize

    try:
        vmem_cap = int(pltpu.get_tpu_info().vmem_capacity_bytes)
    except Exception:  # fall back to the most restrictive generation (v7x)
        vmem_cap = 64 << 20

    # --- lane-dense feature tile from a byte budget ------------------------
    # A single (B, tile_d) x block; double-buffered x + y blocks are ~4x this,
    # so vmem_cap // 16 keeps the pipeline well inside scoped VMEM on every
    # generation (v5e/v6e: 128 MiB physical, v7x: 64 MiB).
    d128 = _round_up(D, 128)
    x_blk_budget = max(1 << 20, min(8 << 20, vmem_cap // 16))
    max_tile_from_budget = max(128, (x_blk_budget // max(1, B * itemsize)) // 128 * 128)
    tile_d = 128
    while tile_d < 4096 and tile_d * 2 <= max_tile_from_budget and tile_d < d128:
        tile_d *= 2
    # Prefer >= 2 feature tiles when D allows, so ("parallel",) can shard tiles
    # across v7x's two TensorCores (harmless on single-TC v5e/v6e).
    if d128 >= 512:
        tile_d = min(tile_d, max(256, _round_up(pl.cdiv(D, 2), 128)))
    n_blocks = pl.cdiv(D, tile_d)

    # VMEM actually needed: double-buffered x, y, params (4 rows), stats (8 rows).
    blk_bytes = B * tile_d * itemsize
    needed = 2 * (2 * blk_bytes + 12 * tile_d * 4)
    vmem_limit = int(min(vmem_cap - (8 << 20),
                         max(2 * needed + (2 << 20), 32 << 20)))
    # TODO(synk): for very large B where even a (B, 128) double-buffered block
    # exceeds the VMEM budget (earliest on v7x), switch to a B-tiled two-pass
    # reduction (sum/sumsq accumulators, ones-row MXU matmul) instead of keeping
    # the whole batch resident; only the whole-B-resident hot path is here.

    params = jnp.stack([
        log_gamma.astype(jnp.float32),
        beta.astype(jnp.float32),
        running_mean.astype(jnp.float32),
        running_var.astype(jnp.float32),
    ])  # (4, D)

    kernel = functools.partial(_bnf_direct_kernel,
                               eps=float(eps), momentum=float(momentum))

    y, stats = pl.pallas_call(
        kernel,
        out_shape=(
            jax.ShapeDtypeStruct((B, D), x.dtype),      # y (exact shape, no pad)
            jax.ShapeDtypeStruct((8, D), jnp.float32),  # packed per-feature rows
        ),
        grid_spec=pl.GridSpec(
            grid=(n_blocks,),
            in_specs=[pl.BlockSpec((B, tile_d), lambda j: (0, j)),
                      pl.BlockSpec((4, tile_d), lambda j: (0, j))],
            out_specs=[pl.BlockSpec((B, tile_d), lambda j: (0, j)),
                       pl.BlockSpec((8, tile_d), lambda j: (0, j))],
        ),
        compiler_params=pltpu.CompilerParams(
            dimension_semantics=("parallel",),
            vmem_limit_bytes=vmem_limit),
    )(x, params)

    bmean = stats[_S_BMEAN]
    bvar = stats[_S_BVAR]
    new_rm = stats[_S_NRM]
    new_rv = stats[_S_NRV]
    logdet = jnp.sum(stats[_S_LDT]).reshape(1)

    # TODO(synk): 'inverse' mode and eval-mode (running-stat) paths are trivial
    # elementwise variants; only the training-mode 'direct' hot path is in-kernel.
    return y, logdet, new_rm, new_rv, bmean, bvar


def _reference(x, log_gamma, beta, running_mean, running_var, eps, momentum):
    bmean = jnp.mean(x, axis=0)
    bvar = jnp.mean((x - bmean) ** 2, axis=0) + eps
    new_rm = running_mean * momentum + bmean * (1.0 - momentum)
    new_rv = running_var * momentum + bvar * (1.0 - momentum)
    x_hat = (x - bmean) / jnp.sqrt(bvar)
    y = jnp.exp(log_gamma) * x_hat + beta
    logdet = jnp.sum(log_gamma - 0.5 * jnp.log(bvar), axis=-1, keepdims=True)
    return y, logdet.reshape(1), new_rm, new_rv, bmean, bvar


if __name__ == "__main__":
    B, D = 8, 32  # batch, num_inputs (D deliberately not a multiple of 128)
    key = jax.random.PRNGKey(0)
    kx, kg, kb, km, kv = jax.random.split(key, 5)

    x = jax.random.normal(kx, (B, D), dtype=jnp.float32) * 2.0 + 0.5
    # The module initializes log_gamma/beta to zeros; use small nonzero values
    # so the gamma/beta paths are actually exercised.
    log_gamma = 0.1 * jax.random.normal(kg, (D,), dtype=jnp.float32)
    beta = 0.1 * jax.random.normal(kb, (D,), dtype=jnp.float32)

    # --- module-default path: momentum = 0.0, fresh buffers (zeros / ones) ---
    rm0 = jnp.zeros((D,), jnp.float32)
    rv0 = jnp.ones((D,), jnp.float32)
    out = batch_norm_flow_direct(x, log_gamma, beta, rm0, rv0,
                                 eps=1e-5, momentum=0.0)
    out = jax.block_until_ready(out)
    ref = _reference(x, log_gamma, beta, rm0, rv0, 1e-5, 0.0)
    for got, want in zip(out, ref):
        assert got.shape == want.shape, (got.shape, want.shape)
        assert jnp.allclose(got, want, atol=2e-5, rtol=1e-5), (got, want)

    # --- nonzero momentum with nonzero prior buffers (exercises the blend) ---
    rm1 = 0.3 * jax.random.normal(km, (D,), dtype=jnp.float32)
    rv1 = 1.0 + 0.2 * jax.nn.softplus(jax.random.normal(kv, (D,), dtype=jnp.float32))
    out2 = batch_norm_flow_direct(x, log_gamma, beta, rm1, rv1,
                                  eps=1e-5, momentum=0.25)
    out2 = jax.block_until_ready(out2)
    ref2 = _reference(x, log_gamma, beta, rm1, rv1, 1e-5, 0.25)
    for got, want in zip(out2, ref2):
        assert got.shape == want.shape, (got.shape, want.shape)
        assert jnp.allclose(got, want, atol=2e-5, rtol=1e-5), (got, want)

    print("KERNEL_OK")
</pallas_src>

<mosaic_0001>
module attributes {stable_mosaic.version = 11 : i64} {
  func.func @_bnf_direct_kernel(%arg0: i32, %arg1: memref<8x128xf32, #tpu.memory_space<vmem>>, %arg2: memref<4x128xf32, #tpu.memory_space<vmem>>, %arg3: memref<8x128xf32, #tpu.memory_space<vmem>>, %arg4: memref<8x128xf32, #tpu.memory_space<vmem>>) attributes {dimension_semantics = [#tpu.dimension_semantics<parallel>], iteration_bounds = array<i64: 1>, scalar_prefetch = 0 : i64, scratch_operands = 0 : i64, tpu.core_type = #tpu.core_type<tc>, window_params = [{transform_indices = @transform_0, window_bounds = array<i64: 8, 128>}, {transform_indices = @transform_1, window_bounds = array<i64: 4, 128>}, {transform_indices = @transform_2, window_bounds = array<i64: 8, 128>}, {transform_indices = @transform_3, window_bounds = array<i64: 8, 128>}]} {
    %c0 = arith.constant 0 : index
    %c0_0 = arith.constant 0 : index
    %0 = vector.load %arg1[%c0, %c0_0] : memref<8x128xf32, #tpu.memory_space<vmem>>, vector<8x128xf32>
    %c0_1 = arith.constant 0 : index
    %c0_2 = arith.constant 0 : index
    %1 = vector.load %arg2[%c0_1, %c0_2] : memref<4x128xf32, #tpu.memory_space<vmem>>, vector<4x128xf32>
    %2 = vector.extract_strided_slice %1 {offsets = [0, 0], sizes = [1, 128], strides = [1, 1]} : vector<4x128xf32> to vector<1x128xf32>
    %3 = vector.extract_strided_slice %1 {offsets = [1, 0], sizes = [1, 128], strides = [1, 1]} : vector<4x128xf32> to vector<1x128xf32>
    %4 = vector.extract_strided_slice %1 {offsets = [2, 0], sizes = [1, 128], strides = [1, 1]} : vector<4x128xf32> to vector<1x128xf32>
    %5 = vector.extract_strided_slice %1 {offsets = [3, 0], sizes = [1, 128], strides = [1, 1]} : vector<4x128xf32> to vector<1x128xf32>
    %cst = arith.constant dense<0.000000e+00> : vector<128xf32>
    %6 = vector.multi_reduction <add>, %0, %cst [0] : vector<8x128xf32> to vector<128xf32>
    %7 = vector.shape_cast %6 : vector<128xf32> to vector<1x128xf32>
    %cst_3 = arith.constant 8.000000e+00 : f32
    %8 = vector.broadcast %cst_3 : f32 to vector<1x128xf32>
    %9 = arith.divf %7, %8 : vector<1x128xf32>
    %10 = vector.broadcast %9 : vector<1x128xf32> to vector<8x128xf32>
    %11 = arith.subf %0, %10 : vector<8x128xf32>
    %12 = arith.mulf %11, %11 : vector<8x128xf32>
    %cst_4 = arith.constant dense<0.000000e+00> : vector<128xf32>
    %13 = vector.multi_reduction <add>, %12, %cst_4 [0] : vector<8x128xf32> to vector<128xf32>
    %14 = vector.shape_cast %13 : vector<128xf32> to vector<1x128xf32>
    %cst_5 = arith.constant 8.000000e+00 : f32
    %15 = vector.broadcast %cst_5 : f32 to vector<1x128xf32>
    %16 = arith.divf %14, %15 : vector<1x128xf32>
    %cst_6 = arith.constant 9.99999974E-6 : f32
    %17 = vector.broadcast %cst_6 : f32 to vector<1x128xf32>
    %18 = arith.addf %16, %17 : vector<1x128xf32>
    %19 = math.exp %2 : vector<1x128xf32>
    %20 = math.rsqrt %18 : vector<1x128xf32>
    %21 = arith.mulf %19, %20 : vector<1x128xf32>
    %22 = arith.mulf %9, %21 : vector<1x128xf32>
    %23 = arith.subf %3, %22 : vector<1x128xf32>
    %24 = vector.broadcast %21 : vector<1x128xf32> to vector<8x128xf32>
    %25 = arith.mulf %0, %24 : vector<8x128xf32>
    %26 = vector.broadcast %23 : vector<1x128xf32> to vector<8x128xf32>
    %27 = arith.addf %25, %26 : vector<8x128xf32>
    %c0_7 = arith.constant 0 : index
    %c0_8 = arith.constant 0 : index
    %28 = vector.load %arg3[%c0_7, %c0_8] : memref<8x128xf32, #tpu.memory_space<vmem>>, vector<8x128xf32>
    tpu.vector_store %arg3[%c0_7, %c0_8], %27 {strides = array<i32>} : memref<8x128xf32, #tpu.memory_space<vmem>>, vector<8x128xf32>,
    %29 = math.log %18 : vector<1x128xf32>
    %cst_9 = arith.constant 5.000000e-01 : f32
    %30 = vector.broadcast %cst_9 : f32 to vector<1x128xf32>
    %31 = arith.mulf %30, %29 : vector<1x128xf32>
    %32 = arith.subf %2, %31 : vector<1x128xf32>
    %cst_10 = arith.constant 0.000000e+00 : f32
    %33 = vector.broadcast %cst_10 : f32 to vector<1x128xf32>
    %34 = arith.mulf %4, %33 : vector<1x128xf32>
    %cst_11 = arith.constant 1.000000e+00 : f32
    %35 = vector.broadcast %cst_11 : f32 to vector<1x128xf32>
    %36 = arith.mulf %9, %35 : vector<1x128xf32>
    %37 = arith.addf %34, %36 : vector<1x128xf32>
    %cst_12 = arith.constant 0.000000e+00 : f32
    %38 = vector.broadcast %cst_12 : f32 to vector<1x128xf32>
    %39 = arith.mulf %5, %38 : vector<1x128xf32>
    %cst_13 = arith.constant 1.000000e+00 : f32
    %40 = vector.broadcast %cst_13 : f32 to vector<1x128xf32>
    %41 = arith.mulf %18, %40 : vector<1x128xf32>
    %42 = arith.addf %39, %41 : vector<1x128xf32>
    %c0_14 = arith.constant 0 : index
    %c0_15 = arith.constant 0 : index
    %43 = vector.load %arg4[%c0_14, %c0_15] : memref<8x128xf32, #tpu.memory_space<vmem>>, vector<1x128xf32>
    tpu.vector_store %arg4[%c0_14, %c0_15], %9 {strides = array<i32>} : memref<8x128xf32, #tpu.memory_space<vmem>>, vector<1x128xf32>,
    %c1 = arith.constant 1 : index
    %c0_16 = arith.constant 0 : index
    %44 = vector.load %arg4[%c1, %c0_16] : memref<8x128xf32, #tpu.memory_space<vmem>>, vector<1x128xf32>
    tpu.vector_store %arg4[%c1, %c0_16], %18 {strides = array<i32>} : memref<8x128xf32, #tpu.memory_space<vmem>>, vector<1x128xf32>,
    %c2 = arith.constant 2 : index
    %c0_17 = arith.constant 0 : index
    %45 = vector.load %arg4[%c2, %c0_17] : memref<8x128xf32, #tpu.memory_space<vmem>>, vector<1x128xf32>
    tpu.vector_store %arg4[%c2, %c0_17], %37 {strides = array<i32>} : memref<8x128xf32, #tpu.memory_space<vmem>>, vector<1x128xf32>,
    %c3 = arith.constant 3 : index
    %c0_18 = arith.constant 0 : index
    %46 = vector.load %arg4[%c3, %c0_18] : memref<8x128xf32, #tpu.memory_space<vmem>>, vector<1x128xf32>
    tpu.vector_store %arg4[%c3, %c0_18], %42 {strides = array<i32>} : memref<8x128xf32, #tpu.memory_space<vmem>>, vector<1x128xf32>,
    %c4 = arith.constant 4 : index
    %c0_19 = arith.constant 0 : index
    %47 = vector.load %arg4[%c4, %c0_19] : memref<8x128xf32, #tpu.memory_space<vmem>>, vector<1x128xf32>
    tpu.vector_store %arg4[%c4, %c0_19], %32 {strides = array<i32>} : memref<8x128xf32, #tpu.memory_space<vmem>>, vector<1x128xf32>,
    %cst_20 = arith.constant 0.000000e+00 : f32
    %48 = vector.broadcast %cst_20 : f32 to vector<3x128xf32>
    %c5 = arith.constant 5 : index
    %c0_21 = arith.constant 0 : index
    %49 = vector.load %arg4[%c5, %c0_21] : memref<8x128xf32, #tpu.memory_space<vmem>>, vector<3x128xf32>
    tpu.vector_store %arg4[%c5, %c0_21], %48 {strides = array<i32>} : memref<8x128xf32, #tpu.memory_space<vmem>>, vector<3x128xf32>,
    return
  }
  func.func @transform_0(%arg0: i32) -> (i32, i32) {
    %c0_i32 = arith.constant 0 : i32
    %c0_i32_0 = arith.constant 0 : i32
    return %c0_i32, %arg0 : i32, i32
  }
  func.func @transform_1(%arg0: i32) -> (i32, i32) {
    %c0_i32 = arith.constant 0 : i32
    %c0_i32_0 = arith.constant 0 : i32
    return %c0_i32, %arg0 : i32, i32
  }
  func.func @transform_2(%arg0: i32) -> (i32, i32) {
    %c0_i32 = arith.constant 0 : i32
    %c0_i32_0 = arith.constant 0 : i32
    return %c0_i32, %arg0 : i32, i32
  }
  func.func @transform_3(%arg0: i32) -> (i32, i32) {
    %c0_i32 = arith.constant 0 : i32
    %c0_i32_0 = arith.constant 0 : i32
    return %c0_i32, %arg0 : i32, i32
  }
}

</mosaic_0001>

<llo_original>
// kernel: tpu_custom_call.1
$region0: #{tpu_custom_call.1}
  #allocation0 [shape = 'u32[]', space=smem, size = 0x4, offset = 0x4, fixed_abs, tag = 'smem constant byte address 0x4 - core index']
  #allocation1 [shape = 'u32[144,128]{1,0:T(1,128)}', space=vmem, size = 0x12000, scoped, tag = 'internal scratch']
  %s0 = inlined_call_operand.hbm [shape: f32[8,32], index: 0, kind: input, shape index: {}]
  %s1 = inlined_call_operand.hbm [shape: f32[4,32], index: 1, kind: input, shape index: {}]
  %s2 = inlined_call_operand.hbm [shape: f32[8,32], index: 2, kind: output, shape index: {0}]
  %s3 = inlined_call_operand.hbm [shape: f32[8,32], index: 3, kind: output, shape index: {1}]
  %4 = xla_tuple %s2, %s3
  %s5 = sld [smem:[#allocation0]]
  $region34: #{tpu_custom_call.1} parent=0
    _
  %s7 = ssub.s32 1, %s5
  %s8 = scalar_select 0, %s7, %s5
  $region1: #{tpu_custom_call.1} parent=0
    #allocation2 [shape = 'u8[4096]{0}', space=vmem, size = 0x1000, scoped, tag = 'input window, operand 0, single buffered']
    #allocation3 [shape = 's32[1]{0}', space=sflag, size = 0x4, scoped, tag = 'scoped memory for tpu_custom_call.1']
    #allocation4 [shape = 's32[1]{0}', space=sflag, size = 0x4, scoped, tag = 'scoped memory for tpu_custom_call.1']
    #allocation5 [shape = 'u8[2048]{0}', space=vmem, size = 0x800, scoped, tag = 'input window, operand 1, single buffered']
    #allocation6 [shape = 's32[1]{0}', space=sflag, size = 0x4, scoped, tag = 'scoped memory for tpu_custom_call.1']
    #allocation7 [shape = 'u8[4096]{0}', space=vmem, size = 0x1000, scoped, tag = 'output window, operand 0, single buffered']
    #allocation8 [shape = 'u8[4096]{0}', space=vmem, size = 0x1000, scoped, tag = 'output window, operand 1, single buffered']
    #allocation9 [shape = 's32[1]{0}', space=sflag, size = 0x4, scoped, tag = 'scoped memory for tpu_custom_call.1']
    %9 = vsyncpa [#allocation3], 0
    %10 = vsyncpa [#allocation6], 0
    %11 = vsyncpa [#allocation4], 0
    %12 = vsyncpa [#allocation9], 0
    // Predicated region
    $region2: #{tpu_custom_call.1} parent=1 // pred_check
      _
    $region3: #{tpu_custom_call.1} parent=1 // pred_check_branch
      %14 = sbr.rel (0) target = $region5
    $region4: #{tpu_custom_call.1} parent=1 // pred_region
      %s16 = ssub.s32 128, 128
      %17 = vsyncadd [#allocation3], %s16
      %s19 = sshll.u32 [#allocation2], 4
      %s20 = int_to_ptr.vmem [resolvable:$true] %s19
      %22 = dma.hbm_to_vmem [thread:$0]  %s0, 128, %s20, [#allocation3]
    $region5: #{tpu_custom_call.1} parent=1 // pred_fallthru
      _
    // Predicated region
    $region6: #{tpu_custom_call.1} parent=1 // pred_check
      _
    $region7: #{tpu_custom_call.1} parent=1 // pred_check_branch
      %24 = sbr.rel (0) target = $region9
    $region8: #{tpu_custom_call.1} parent=1 // pred_region
      %s26 = ssub.s32 64, 64
      %27 = vsyncadd [#allocation6], %s26
      %s29 = sshll.u32 [#allocation5], 4
      %s30 = int_to_ptr.vmem [resolvable:$true] %s29
      %32 = dma.hbm_to_vmem [thread:$0]  %s1, 64, %s30, [#allocation6]
    $region9: #{tpu_custom_call.1} parent=1 // pred_fallthru
      _
    // Predicated region
    $region10: #{tpu_custom_call.1} parent=1 // pred_check
      _
    $region11: #{tpu_custom_call.1} parent=1 // pred_check_branch
      %34 = sbr.rel (0) target = $region13
    $region12: #{tpu_custom_call.1} parent=1 // pred_region
      %35 = dma.done [#allocation3], 128
    $region13: #{tpu_custom_call.1} parent=1 // pred_fallthru
      _
    // Predicated region
    $region14: #{tpu_custom_call.1} parent=1 // pred_check
      _
    $region15: #{tpu_custom_call.1} parent=1 // pred_check_branch
      %37 = sbr.rel (0) target = $region17
    $region16: #{tpu_custom_call.1} parent=1 // pred_region
      %38 = dma.done [#allocation6], 64
    $region17: #{tpu_custom_call.1} parent=1 // pred_fallthru
      _
    %v39 = vld [vmem:[#allocation2] sm:$0xff]
    %v40 = vld [vmem:[#allocation5] sm:$0xf]
    %v41 = vrot.slane %v39, 4
    %v42 = vadd.f32 %v39, %v41
    %v43 = vrot.slane %v42, 2
    %v44 = vadd.f32 %v42, %v43
    %v45 = vrot.slane %v44, 1
    %v46 = vadd.f32 %v44, %v45
    %v47 = vrcp.pop 8.0
    %v48 = vmul.f32 %v46, %v47
    %v49 = vsub.f32 %v39, %v48
    %v50 = vmul.f32 %v49, %v49
    %v51 = vrot.slane %v50, 4
    %v52 = vadd.f32 %v50, %v51
    %v53 = vrot.slane %v52, 2
    %v54 = vadd.f32 %v52, %v53
    %v55 = vrot.slane %v54, 1
    %v56 = vadd.f32 %v54, %v55
    %v57 = vmul.f32 %v56, %v47
    %v58 = vadd.f32 %v57, 1e-05
    %v59 = vmul.f32 %v40, 1.442695
    %v60 = vpow.pop %v59
    %v61 = vrsqrt.pop %v58
    %v62 = vmul.f32 %v60, %v61
    %v63 = vmul.f32 %v48, %v62
    %v65 = vrot.slane %v63, 7
    %v67 = vsub.f32 %v40, %v65
    %v68 = vlaneseq
    %v69 = vshrl.u32 %v68, 7
    %v70 = vsub.s32 0, %v69
    %v71 = vrot.slane %v62, %v70
    %v72 = vmul.f32 %v39, %v71
    %v73 = vlaneseq
    %v74 = vshrl.u32 %v73, 7
    %v75 = vsub.s32 1, %v74
    %v76 = vrot.slane %v67, %v75
    %v77 = vadd.f32 %v72, %v76
    %78 = vst [vmem:[#allocation7] sm:$0xff] %v77
    %v79 = vlog2.pop %v58
    %v80 = vmul.f32 %v79, 0.6931472
    %v81 = vmul.f32 %v80, 0.5
    %v82 = vsub.f32 %v40, %v81
    %v83 = vmul.f32 %v40, 0.0
    %v84 = vadd.f32 %v83, %v48
    %v85 = vadd.f32 %v83, %v58
    %86 = vst [vmem:[#allocation8] sm:$0x1] %v48
    %87 = vst [vmem:[#allocation8 + $0x1] sm:$0x1] %v58
    %88 = vst [vmem:[#allocation8] sm:$0x4] %v84
    %89 = vst [vmem:[#allocation8] sm:$0x8] %v85
    %90 = vst [vmem:[#allocation8 + $0x4] sm:$0x1] %v82
    %91 = vst [vmem:[#allocation8 + $0x5] sm:$0x7] 0.0
    // Predicated region
    $region18: #{tpu_custom_call.1} parent=1 // pred_check
      _
    $region19: #{tpu_custom_call.1} parent=1 // pred_check_branch
      %93 = sbr.rel (0) target = $region21
    $region20: #{tpu_custom_call.1} parent=1 // pred_region
      %s95 = ssub.s32 128, 128
      %96 = vsyncadd [#allocation4], %s95
      %s98 = sshll.u32 [#allocation7], 4
      %s99 = int_to_ptr.vmem [resolvable:$true] %s98
      %101 = dma.vmem_to_hbm [thread:$0]  %s99, 128, %s2, [#allocation4]
    $region21: #{tpu_custom_call.1} parent=1 // pred_fallthru
      _
    // Predicated region
    $region22: #{tpu_custom_call.1} parent=1 // pred_check
      _
    $region23: #{tpu_custom_call.1} parent=1 // pred_check_branch
      %103 = sbr.rel (0) target = $region25
    $region24: #{tpu_custom_call.1} parent=1 // pred_region
      %s105 = ssub.s32 128, 128
      %106 = vsyncadd [#allocation9], %s105
      %s108 = sshll.u32 [#allocation8], 4
      %s109 = int_to_ptr.vmem [resolvable:$true] %s108
      %111 = dma.vmem_to_hbm [thread:$0]  %s109, 128, %s3, [#allocation9]
    $region25: #{tpu_custom_call.1} parent=1 // pred_fallthru
      _
    // Predicated region
    $region26: #{tpu_custom_call.1} parent=1 // pred_check
      _
    $region27: #{tpu_custom_call.1} parent=1 // pred_check_branch
      %113 = sbr.rel (0) target = $region29
    $region28: #{tpu_custom_call.1} parent=1 // pred_region
      %114 = dma.done [#allocation4], 128
    $region29: #{tpu_custom_call.1} parent=1 // pred_fallthru
      _
    // Predicated region
    $region30: #{tpu_custom_call.1} parent=1 // pred_check
      _
    $region31: #{tpu_custom_call.1} parent=1 // pred_check_branch
      %116 = sbr.rel (0) target = $region33
    $region32: #{tpu_custom_call.1} parent=1 // pred_region
      %117 = dma.done [#allocation9], 128
    $region33: #{tpu_custom_call.1} parent=1 // pred_fallthru
      _
    %118 = vsyncpa [#allocation3], 1
    %119 = vsyncpa [#allocation6], 1
    %120 = vsyncpa [#allocation4], 1
    %121 = vsyncpa [#allocation9], 1

</llo_original>
